<compile_context>
chip_gen: v7x
topology: tpu7x:2x2x1
jax: 0.10.0
libtpu: 0.0.40
codegen_flags: <defaults>
</compile_context>

<pallas_src>
import math

import jax
import jax.numpy as jnp
from jax.experimental import pallas as pl
from jax.experimental.pallas import tpu as pltpu


_SUBLANE = 8


def _device_kind() -> str:
    try:
        return jax.devices()[0].device_kind.lower()
    except Exception:  # pragma: no cover - defensive
        return ""


def _lane_dense_view(n_elems: int):
    """Pick a 2D (rows, lane) view whose lane is a multiple of 128 dividing n."""
    for lane in (1024, 512, 256, 128):
        if n_elems % lane == 0:
            return n_elems // lane, lane
    return None


# ----------------------------------------------------------------------------
# Path 1 (preferred materialized copy): direct HBM -> HBM DMA, no VMEM staging.
# ----------------------------------------------------------------------------
def _make_hbm_copy_kernel(n_chunks: int, chunk_rows: int):
    def kernel(x_hbm, o_hbm, sems):
        copies = []
        for c in range(n_chunks):
            start = c * chunk_rows
            cp = pltpu.make_async_copy(
                x_hbm.at[pl.ds(start, chunk_rows)],
                o_hbm.at[pl.ds(start, chunk_rows)],
                sems.at[c],
            )
            cp.start()
            copies.append(cp)
        for cp in copies:
            cp.wait()

    return kernel


def hbm_copy(x: jax.Array, *, max_chunks: int = 4) -> jax.Array:
    """Materialize a copy of `x` with direct HBM->HBM DMA descriptors.

    No VMEM/vreg staging: the kernel only issues (a few) DMA descriptors and
    waits, reaching the HBM roofline for this pure identity copy.  Handles
    arbitrary element counts (no (8,128) BlockSpec constraint).
    """
    n = x.size
    layout = _lane_dense_view(n)
    if layout is None:
        view = x.reshape(n)          # 1-D contiguous copy; DMA handles any length
        rows = n
    else:
        rows, lane = layout
        view = x.reshape(rows, lane)

    # Split into a few equal chunks (if evenly divisible) so several DMAs can
    # be in flight at once; otherwise one descriptor for the whole array.
    chunks = 1
    for c in (max_chunks, 2):
        if c >= 2 and rows >= c and rows % c == 0:
            chunks = c
            break
    chunk_rows = rows // chunks

    out = pl.pallas_call(
        _make_hbm_copy_kernel(chunks, chunk_rows),
        out_shape=jax.ShapeDtypeStruct(view.shape, view.dtype),
        in_specs=[pl.BlockSpec(memory_space=pl.ANY)],
        out_specs=pl.BlockSpec(memory_space=pl.ANY),
        scratch_shapes=[pltpu.SemaphoreType.DMA((chunks,))],
        cost_estimate=pl.CostEstimate(
            flops=0, transcendentals=0, bytes_accessed=2 * x.nbytes
        ),
    )(view)
    return out.reshape(x.shape)


# ----------------------------------------------------------------------------
# Path 2 (optional): tiled, lane-dense, byte-budgeted VMEM copy pipeline.
# ----------------------------------------------------------------------------
def _copy_kernel(x_ref, o_ref):
    o_ref[...] = x_ref[...]


def _tile_budget_bytes(kind: str) -> int:
    if "v5" in kind:          # 16 MiB scoped-VMEM default -> keep 2x2x3 MiB = 12 MiB
        return 3 << 20
    if "v7" in kind:          # 64 MiB physical; raise scoped limit explicitly
        return 8 << 20
    return 4 << 20            # v6e and default: 2x2x4 MiB = 16 MiB < 32 MiB default


def tiled_copy(x: jax.Array, *, block_budget_bytes: int | None = None) -> jax.Array:
    """Tiled lane-dense VMEM copy (double-buffered BlockSpec pipeline).

    Kept for callers that want the image staged through VMEM; for a plain
    identity copy prefer `hbm_copy` (no staging) or returning the array.
    """
    n = x.size
    layout = _lane_dense_view(n)
    if layout is None:
        # Non-128-divisible element counts: fall back to the direct DMA path
        # (handles any shape) instead of one giant serial (1, n) block.
        return hbm_copy(x)

    rows, lane = layout
    x2 = x.reshape(rows, lane)

    kind = _device_kind()
    budget = block_budget_bytes if block_budget_bytes is not None else _tile_budget_bytes(kind)
    bytes_per_row = lane * x.dtype.itemsize
    block_rows = max(_SUBLANE, (budget // bytes_per_row) // _SUBLANE * _SUBLANE)
    block_rows = min(block_rows, rows)
    grid = (pl.cdiv(rows, block_rows),)

    # v7x: shard row tiles across the 2 TensorCores and raise the scoped VMEM
    # limit so 2 arrays x 2 buffers x 8 MiB tiles fit (32 MiB > 32 MiB default).
    if "v7" in kind and grid[0] >= 2 and grid[0] % 2 == 0:
        dims = (pltpu.CORE_PARALLEL,)
    else:
        dims = ("parallel",)
    cp_kwargs = dict(dimension_semantics=dims)
    if "v7" in kind:
        cp_kwargs["vmem_limit_bytes"] = 40 << 20

    out = pl.pallas_call(
        _copy_kernel,
        out_shape=jax.ShapeDtypeStruct((rows, lane), x.dtype),
        grid=grid,
        in_specs=[pl.BlockSpec((block_rows, lane), lambda i: (i, 0))],
        out_specs=pl.BlockSpec((block_rows, lane), lambda i: (i, 0)),
        compiler_params=pltpu.CompilerParams(**cp_kwargs),
        cost_estimate=pl.CostEstimate(
            flops=0, transcendentals=0, bytes_accessed=2 * x.nbytes
        ),
    )(x2)
    return out.reshape(x.shape)


# ----------------------------------------------------------------------------
# JAX mirror of BaseConvViTAdapter
# ----------------------------------------------------------------------------
class BaseConvViTAdapterPallas:
    """JAX/Pallas mirror of BaseConvViTAdapter (abstract; no parameters)."""

    # ---- deterministic equivalents of _init_weights ------------------------

    @staticmethod
    def init_linear(key, out_features, in_features):
        # trunc_normal_(weight, std=0.02); bias = 0
        w = 0.02 * jax.random.truncated_normal(
            key, -2.0, 2.0, (out_features, in_features), jnp.float32
        )
        b = jnp.zeros((out_features,), jnp.float32)
        return w, b

    @staticmethod
    def init_norm(num_features):
        # LayerNorm / BatchNorm2d: weight = 1, bias = 0
        return (jnp.ones((num_features,), jnp.float32),
                jnp.zeros((num_features,), jnp.float32))

    @staticmethod
    def init_conv(key, out_ch, in_ch, kh, kw, groups=1):
        # weight ~ N(0, sqrt(2 / fan_out)); bias = 0
        fan_out = (kh * kw * out_ch) // groups
        std = math.sqrt(2.0 / fan_out)
        w = std * jax.random.normal(key, (out_ch, in_ch // groups, kh, kw),
                                    jnp.float32)
        b = jnp.zeros((out_ch,), jnp.float32)
        return w, b

    # TODO(synk): _init_deform_weights targets MSDeformAttn, which only exists
    #             in concrete subclasses; nothing to initialize here.

    # ---- forward ------------------------------------------------------------

    def forward(self, input_image, vit_encoder):
        # Faithful to the PyTorch base class: abstract.
        raise NotImplementedError

    def forward_passthrough(self, input_image, *, materialize=False, tiled=False):
        """Runnable stand-in for the abstract forward.

        materialize=False (default): zero-cost path -- return the array
            unchanged.  This is the only path that avoids HBM traffic.
        materialize=True: produce a fresh copy.  tiled=False uses a direct
            HBM->HBM DMA (no VMEM staging); tiled=True uses the byte-budgeted
            BlockSpec VMEM pipeline.  Note: even a DMA copy reads + writes the
            full array (2x nbytes of HBM traffic); to reuse the input buffer
            in place the caller must donate it at the jit boundary
            (jax.jit(..., donate_argnums=...)).
        """
        if not materialize:
            return input_image
        return tiled_copy(input_image) if tiled else hbm_copy(input_image)


# ----------------------------------------------------------------------------
# Demo / smoke test
# ----------------------------------------------------------------------------
if __name__ == "__main__":
    key = jax.random.PRNGKey(0)
    k_img, k_mid, k_odd, k_lin, k_conv = jax.random.split(key, 5)

    adapter = BaseConvViTAdapterPallas()

    # Exercise the deterministic init rules (shape bookkeeping only).
    _w_lin, _b_lin = adapter.init_linear(k_lin, 32, 4)
    _g_ln, _b_ln = adapter.init_norm(32)
    _w_cv, _b_cv = adapter.init_conv(k_conv, 8, 4, 3, 3)

    # Small NCHW image, consistent with what a ConvViT adapter would receive.
    x = jax.random.normal(k_img, (2, 4, 16, 16), jnp.float32)

    # 1) Zero-cost default path.
    assert adapter.forward_passthrough(x) is x

    # 2) Materialized copy via direct HBM->HBM DMA (no VMEM staging).
    y = adapter.forward_passthrough(x, materialize=True)
    y = jax.block_until_ready(y)
    assert y.shape == x.shape and y.dtype == x.dtype
    assert bool(jnp.array_equal(y, x))

    # 3) Non-128-divisible element count (210 elems) -> DMA path handles it.
    x_odd = jax.random.normal(k_odd, (2, 3, 7, 5), jnp.float32)
    y_odd = jax.block_until_ready(adapter.forward_passthrough(x_odd, materialize=True))
    assert bool(jnp.array_equal(y_odd, x_odd))

    # 4) Tiled VMEM pipeline path; small budget override forces a multi-tile
    #    grid (rows=32, lane=1024 f32 -> 8-row blocks -> grid of 4) while
    #    keeping the demo input small.
    x_mid = jax.random.normal(k_mid, (8, 4, 32, 32), jnp.float32)
    y_mid = jax.block_until_ready(tiled_copy(x_mid, block_budget_bytes=32 << 10))
    assert bool(jnp.array_equal(y_mid, x_mid))

    # 5) Tiled path with the device-default byte budget (single full block here).
    y_tiled = jax.block_until_ready(adapter.forward_passthrough(
        x, materialize=True, tiled=True))
    assert bool(jnp.array_equal(y_tiled, x))

    print("KERNEL_OK")
</pallas_src>

<mosaic_0001>
module attributes {stable_mosaic.version = 11 : i64} {
  func.func @kernel(%arg0: memref<2x1024xf32, #tpu.memory_space<any>>, %arg1: memref<2x1024xf32, #tpu.memory_space<any>>, %arg2: memref<2x!tpu.dma_semaphore, #tpu.memory_space<semaphore_mem>>) attributes {dimension_semantics = [], scalar_prefetch = 0 : i64, scratch_operands = 1 : i64, tpu.core_type = #tpu.core_type<tc>} {
    %c0_i32 = arith.constant 0 : i32
    %c0_i32_0 = arith.constant 0 : i32
    %c0_i32_1 = arith.constant 0 : i32
    %0 = tpu.memref_slice %arg0[%c0_i32_0, %c0_i32_1] : memref<2x1024xf32, #tpu.memory_space<any>> -> memref<1x1024xf32, #tpu.memory_space<any>>
    %c0_i32_2 = arith.constant 0 : i32
    %c0_i32_3 = arith.constant 0 : i32
    %1 = tpu.memref_slice %arg1[%c0_i32_2, %c0_i32_3] : memref<2x1024xf32, #tpu.memory_space<any>> -> memref<1x1024xf32, #tpu.memory_space<any>>
    %2 = tpu.memref_slice %arg2[%c0_i32] : memref<2x!tpu.dma_semaphore, #tpu.memory_space<semaphore_mem>> -> memref<1x!tpu.dma_semaphore, #tpu.memory_space<semaphore_mem>>
    %3 = tpu.memref_squeeze %2 : memref<1x!tpu.dma_semaphore, #tpu.memory_space<semaphore_mem>> -> memref<!tpu.dma_semaphore, #tpu.memory_space<semaphore_mem>>
    tpu.enqueue_dma source(%0 : memref<1x1024xf32, #tpu.memory_space<any>>) target(%1 : memref<1x1024xf32, #tpu.memory_space<any>>) target_semaphore(%3 : memref<!tpu.dma_semaphore, #tpu.memory_space<semaphore_mem>>)
    %c1_i32 = arith.constant 1 : i32
    %c1_i32_4 = arith.constant 1 : i32
    %c0_i32_5 = arith.constant 0 : i32
    %4 = tpu.memref_slice %arg0[%c1_i32_4, %c0_i32_5] : memref<2x1024xf32, #tpu.memory_space<any>> -> memref<1x1024xf32, #tpu.memory_space<any>>
    %c1_i32_6 = arith.constant 1 : i32
    %c0_i32_7 = arith.constant 0 : i32
    %5 = tpu.memref_slice %arg1[%c1_i32_6, %c0_i32_7] : memref<2x1024xf32, #tpu.memory_space<any>> -> memref<1x1024xf32, #tpu.memory_space<any>>
    %6 = tpu.memref_slice %arg2[%c1_i32] : memref<2x!tpu.dma_semaphore, #tpu.memory_space<semaphore_mem>> -> memref<1x!tpu.dma_semaphore, #tpu.memory_space<semaphore_mem>>
    %7 = tpu.memref_squeeze %6 : memref<1x!tpu.dma_semaphore, #tpu.memory_space<semaphore_mem>> -> memref<!tpu.dma_semaphore, #tpu.memory_space<semaphore_mem>>
    tpu.enqueue_dma source(%4 : memref<1x1024xf32, #tpu.memory_space<any>>) target(%5 : memref<1x1024xf32, #tpu.memory_space<any>>) target_semaphore(%7 : memref<!tpu.dma_semaphore, #tpu.memory_space<semaphore_mem>>)
    %c0_i32_8 = arith.constant 0 : i32
    %c0_i32_9 = arith.constant 0 : i32
    %c0_i32_10 = arith.constant 0 : i32
    %8 = tpu.memref_slice %arg0[%c0_i32_9, %c0_i32_10] : memref<2x1024xf32, #tpu.memory_space<any>> -> memref<1x1024xf32, #tpu.memory_space<any>>
    %c0_i32_11 = arith.constant 0 : i32
    %c0_i32_12 = arith.constant 0 : i32
    %9 = tpu.memref_slice %arg1[%c0_i32_11, %c0_i32_12] : memref<2x1024xf32, #tpu.memory_space<any>> -> memref<1x1024xf32, #tpu.memory_space<any>>
    %10 = tpu.memref_slice %arg2[%c0_i32_8] : memref<2x!tpu.dma_semaphore, #tpu.memory_space<semaphore_mem>> -> memref<1x!tpu.dma_semaphore, #tpu.memory_space<semaphore_mem>>
    %11 = tpu.memref_squeeze %10 : memref<1x!tpu.dma_semaphore, #tpu.memory_space<semaphore_mem>> -> memref<!tpu.dma_semaphore, #tpu.memory_space<semaphore_mem>>
    tpu.wait_dma2 semaphore(%11 : memref<!tpu.dma_semaphore, #tpu.memory_space<semaphore_mem>>) src(%8 : memref<1x1024xf32, #tpu.memory_space<any>>) dst(%9 : memref<1x1024xf32, #tpu.memory_space<any>>)
    %c1_i32_13 = arith.constant 1 : i32
    %c1_i32_14 = arith.constant 1 : i32
    %c0_i32_15 = arith.constant 0 : i32
    %12 = tpu.memref_slice %arg0[%c1_i32_14, %c0_i32_15] : memref<2x1024xf32, #tpu.memory_space<any>> -> memref<1x1024xf32, #tpu.memory_space<any>>
    %c1_i32_16 = arith.constant 1 : i32
    %c0_i32_17 = arith.constant 0 : i32
    %13 = tpu.memref_slice %arg1[%c1_i32_16, %c0_i32_17] : memref<2x1024xf32, #tpu.memory_space<any>> -> memref<1x1024xf32, #tpu.memory_space<any>>
    %14 = tpu.memref_slice %arg2[%c1_i32_13] : memref<2x!tpu.dma_semaphore, #tpu.memory_space<semaphore_mem>> -> memref<1x!tpu.dma_semaphore, #tpu.memory_space<semaphore_mem>>
    %15 = tpu.memref_squeeze %14 : memref<1x!tpu.dma_semaphore, #tpu.memory_space<semaphore_mem>> -> memref<!tpu.dma_semaphore, #tpu.memory_space<semaphore_mem>>
    tpu.wait_dma2 semaphore(%15 : memref<!tpu.dma_semaphore, #tpu.memory_space<semaphore_mem>>) src(%12 : memref<1x1024xf32, #tpu.memory_space<any>>) dst(%13 : memref<1x1024xf32, #tpu.memory_space<any>>)
    return
  }
}

</mosaic_0001>

<llo_original>
// kernel: tpu_custom_call.1
$region0: #{tpu_custom_call.1}
  #allocation0 [shape = 'u32[]', space=smem, size = 0x4, offset = 0x4, fixed_abs, tag = 'smem constant byte address 0x4 - core index']
  #allocation1 [shape = 'u32[144,128]{1,0:T(1,128)}', space=vmem, size = 0x12000, scoped, tag = 'internal scratch']
  #allocation2 [shape = 's32[2]{0}', space=sflag, size = 0x8, scoped, tag = 'scratch operand']
  #allocation3 [shape = 's32[]', space=sflag, size = 0x4, offset = 0, fixed_abs, tag = 'sflag constant byte address 0x0 - dummy sync flag']
  #allocation5 [shape = 's32[]', space=sflag, size = 0x4, offset = 0, fixed_abs, tag = 'sflag constant byte address 0x0 - dummy sync flag']
  %s0 = inlined_call_operand.hbm [shape: f32[2,1024], index: 0, kind: input, shape index: {}]
  %s1 = inlined_call_operand.hbm [shape: f32[2,1024], index: 1, kind: output, shape index: {}]
  %s2 = sld [smem:[#allocation0]]
  $region2: #{tpu_custom_call.1} parent=0
    _
  %s4 = ssub.s32 1, %s2
  %s5 = scalar_select 0, %s4, %s2
  $region1: #{tpu_custom_call.1} parent=0
    #allocation4 [shape = 'u32[3]{0}', space=smem, size = 0xc, scoped, tag = 'DMA stride descriptor']
    #allocation6 [shape = 'u32[3]{0}', space=smem, size = 0xc, scoped, tag = 'DMA stride descriptor']
    %s7 = sshll.u32 1, 14
    %s8 = sxor.u32 4294967295, %s7
    %s11 = sshll.u32 3, 24
    %s12 = sxor.u32 4294967295, %s11
    %s13 = sand.u32 0, %s12
    %s15 = sor.u32 %s13, 0
    %18 = sst [smem:[#allocation4]] 32
    %s19 = scalar_lea.smem [#allocation4], 1
    %20 = sst [smem:[%s19]] 32
    %s21 = scalar_lea.smem [#allocation4], 2
    %22 = sst [smem:[%s21]] 1
    %24 = dma.general %s0, 128, %s1, [#allocation2], [#allocation3], [#allocation4], %s15, 0
    %s25 = scalar_lea.hbm %s0, 16
    %s26 = scalar_lea.hbm %s1, 16
    %s27 = scalar_lea.sflag [#allocation2], 1
    %s29 = sshll.u32 1, 14
    %s30 = sxor.u32 4294967295, %s29
    %s33 = sshll.u32 3, 24
    %s34 = sxor.u32 4294967295, %s33
    %s35 = sand.u32 0, %s34
    %s37 = sor.u32 %s35, 0
    %40 = sst [smem:[#allocation6]] 32
    %s41 = scalar_lea.smem [#allocation6], 1
    %42 = sst [smem:[%s41]] 32
    %s43 = scalar_lea.smem [#allocation6], 2
    %44 = sst [smem:[%s43]] 1
    %46 = dma.general %s25, 128, %s26, %s27, [#allocation5], [#allocation6], %s37, 0
    %s47 = smul.u32 1, 8
    %s48 = sshll.u32 %s47, 4
    %49 = dma.done [#allocation2], %s48
    %s50 = sshll.u32 %s47, 4
    %51 = dma.done %s27, %s50
  %52 = vsyncmov [#allocation2]
  %s53 = vpop.sfrf %52
  %p54 = scmp.eq.s32.totalorder %s53, 0
  %p55 = pneg %p54
  %57 = shalt.err (%p55)
  %s58 = scalar_lea.sflag [#allocation2], 1
  %59 = vsyncmov %s58
  %s60 = vpop.sfrf %59
  %p61 = scmp.eq.s32.totalorder %s60, 0
  %p62 = pneg %p61
  %64 = shalt.err (%p62)

</llo_original>
